<compile_context>
chip_gen: v6e
topology: v6e:2x2x1
jax: 0.10.0
libtpu: 0.0.40
codegen_flags: <defaults>
</compile_context>

<pallas_src>
import jax
import jax.numpy as jnp
from jax import lax
from jax.experimental import pallas as pl
from jax.experimental.pallas import tpu as pltpu


# --------------------------------------------------------------------------- #
# Kernel
# --------------------------------------------------------------------------- #
def repvgg_kernel(x_ref, w_ref, b_ref, o_ref):
    # x_ref: (NB, H+2, KW)   bf16 zero-padded input, (W+2, Cin) merged on lanes
    # w_ref: (3, KW, WCb)    bf16 banded 3x3 weights (1x1 branch pre-folded)
    # b_ref: (1, WCb)        f32 combined bias, tiled over W (zero in pad lanes)
    # o_ref: (NB, H, WCb)
    NB = x_ref.shape[0]
    H = o_ref.shape[1]

    def one_image(i):
        # 3x3 conv == 3 row-shifted 2-D matmuls; all dx taps (and the folded
        # 1x1) live inside the K contraction.  Accumulator comes straight from
        # the first matmul, f32 accumulation, no reshapes anywhere.
        acc = jnp.dot(x_ref[i, 0:H, :], w_ref[0],
                      preferred_element_type=jnp.float32)
        acc = acc + jnp.dot(x_ref[i, 1:H + 1, :], w_ref[1],
                            preferred_element_type=jnp.float32)
        acc = acc + jnp.dot(x_ref[i, 2:H + 2, :], w_ref[2],
                            preferred_element_type=jnp.float32)
        o_ref[i] = jnp.maximum(acc + b_ref[...], 0.0).astype(o_ref.dtype)

    if NB <= 8:                       # short fixed trip-count: static unroll
        for i in range(NB):
            one_image(i)
    else:                             # large batch tiles: rolled loop
        def body(i, carry):
            one_image(i)
            return carry
        lax.fori_loop(0, NB, body, 0)


# --------------------------------------------------------------------------- #
# Weight preparation (done once, reused across calls)
# --------------------------------------------------------------------------- #
def build_banded_weight(w3_hwio, W):
    """(3, 3, Cin, Cout) -> (3, (W+2)*Cin, W*Cout) banded (Toeplitz-over-W) weights."""
    _, _, Cin, Cout = w3_hwio.shape
    jp = jnp.arange(W + 2)[:, None]                    # padded input column j'
    j = jnp.arange(W)[None, :]                         # output column j
    dx = jp - j                                        # (W+2, W)
    onehot = (dx[None, :, :] == jnp.arange(3)[:, None, None]).astype(w3_hwio.dtype)
    # band[dy, j', ci, j, co] = w3[dy, j'-j, ci, co] if 0 <= j'-j <= 2 else 0
    band = jnp.einsum('xpj,dxio->dpijo', onehot, w3_hwio)
    return band.reshape(3, (W + 2) * Cin, W * Cout)


def prepare_repvgg_weights(w3_hwio, bias, W, *, compute_dtype=jnp.bfloat16):
    """Build the banded weight + tiled bias once.

    The merged (W, Cout) lane axis is zero-padded to a multiple of 128 so the
    kernel's output stores are lane-dense (unmasked vst).  Returns
    (w_band: (3, (W+2)*Cin, WC_pad) bf16, bias_row: (1, WC_pad) f32).
    """
    _, _, _, Cout = w3_hwio.shape
    WC = W * Cout
    WC_pad = ((WC + 127) // 128) * 128
    w_band = build_banded_weight(w3_hwio.astype(compute_dtype), W)
    bias_row = jnp.tile(bias.reshape(-1).astype(jnp.float32), W).reshape(1, WC)
    if WC_pad != WC:
        w_band = jnp.pad(w_band, ((0, 0), (0, 0), (0, WC_pad - WC)))
        bias_row = jnp.pad(bias_row, ((0, 0), (0, WC_pad - WC)))
    return w_band, bias_row


# --------------------------------------------------------------------------- #
# Layout helpers (only needed at the NCHW boundary; chained blocks should stay
# in the packed layout)
# --------------------------------------------------------------------------- #
def nchw_to_lin(x_nchw, compute_dtype=jnp.bfloat16):
    N, Cin, H, W = x_nchw.shape
    x_nhwc = jnp.transpose(x_nchw, (0, 2, 3, 1))
    x_pad = jnp.pad(x_nhwc, ((0, 0), (1, 1), (1, 1), (0, 0)))
    return x_pad.reshape(N, H + 2, (W + 2) * Cin).astype(compute_dtype)


def lin_to_nchw(out_lin, W, Cout):
    N, H, _ = out_lin.shape
    y = out_lin[..., :W * Cout].reshape(N, H, W, Cout)
    return jnp.transpose(y, (0, 3, 1, 2))


# --------------------------------------------------------------------------- #
# Pallas call wrapper (packed-layout entry point)
# --------------------------------------------------------------------------- #
def _vmem_budget_bytes():
    """Per-generation VMEM budget (v7x: 64 MiB/TC, v5e/v6e: 128 MiB)."""
    try:
        info = pltpu.get_tpu_info()
        vmem_bytes = int(getattr(info, "vmem_capacity_bytes", 0) or 0)
    except Exception:
        vmem_bytes = 0
    if vmem_bytes <= 0:
        vmem_bytes = 64 * 1024 * 1024          # conservative fallback (v7x-sized)
    # ~52 MiB on a 64 MiB part, ~105 MiB on a 128 MiB part.
    vmem_limit = max(32 * 2**20,
                     min(int(vmem_bytes * 0.82), vmem_bytes - 8 * 2**20))
    return int(vmem_limit)


def repvgg_block_lin(x_lin, w_band, bias_row, *, out_dtype=jnp.float32,
                     batch_block=None, wc_block=None):
    """x_lin: (N, H+2, (W+2)*Cin) in the kernel's compute dtype (bf16).
    w_band/bias_row: from prepare_repvgg_weights.
    Returns (N, H, WC_pad) with ReLU applied (pad lanes are zero)."""
    N, Hp2, KW = x_lin.shape
    H = Hp2 - 2
    WCp = w_band.shape[-1]
    in_itemsize = jnp.dtype(x_lin.dtype).itemsize
    out_itemsize = jnp.dtype(out_dtype).itemsize
    w_itemsize = jnp.dtype(w_band.dtype).itemsize

    vmem_limit = _vmem_budget_bytes()
    block_budget = int(vmem_limit * 0.85)

    # Output-column tile: largest multiple of 128 (<= 512) that divides WC_pad.
    if wc_block is None:
        wc_block = WCp
        if WCp % 128 == 0:
            for cand in (512, 384, 256, 128):
                if WCp % cand == 0:
                    wc_block = cand
                    break
    if WCp % wc_block != 0:
        wc_block = WCp

    w_block_bytes = 3 * KW * wc_block * w_itemsize
    bias_bytes = wc_block * 4
    per_image_in = Hp2 * KW * in_itemsize
    per_image_out = H * wc_block * out_itemsize

    # Batch tile sized to fill most of the VMEM budget (x2 for double buffers).
    if batch_block is None:
        avail = block_budget - 2 * (w_block_bytes + bias_bytes)
        batch_block = max(1, avail // (2 * (per_image_in + per_image_out)))
        batch_block = int(min(batch_block, N, 1024))
    batch_block = max(1, min(int(batch_block), N))

    n_tiles = pl.cdiv(N, batch_block)
    j_tiles = WCp // wc_block

    # Keep >= 2 grid steps on a parallel axis so both TensorCores of a
    # dual-core chip (v7x) get work even when the whole batch fits one block.
    if n_tiles * j_tiles < 2 and N >= 2:
        batch_block = (N + 1) // 2
        n_tiles = pl.cdiv(N, batch_block)

    # cdiv grid + zero-padded last batch tile (padded rows are sliced off).
    N_pad = n_tiles * batch_block
    if N_pad != N:
        x_lin = jnp.pad(x_lin, ((0, N_pad - N), (0, 0), (0, 0)))

    # Grid order: keep the LARGER operand resident across the inner axis
    # (the array whose index_map ignores the inner axis is not re-DMA'd).
    in_block_bytes = batch_block * per_image_in
    n_outer = in_block_bytes >= w_block_bytes

    in_shape = (batch_block, Hp2, KW)
    w_shape = (3, KW, wc_block)
    b_shape = (1, wc_block)
    o_shape = (batch_block, H, wc_block)

    if n_outer:
        grid = (n_tiles, j_tiles)
        in_spec = pl.BlockSpec(in_shape, lambda n, j: (n, 0, 0))
        w_spec = pl.BlockSpec(w_shape, lambda n, j: (0, 0, j))
        b_spec = pl.BlockSpec(b_shape, lambda n, j: (0, j))
        out_spec = pl.BlockSpec(o_shape, lambda n, j: (n, 0, j))
    else:
        grid = (j_tiles, n_tiles)
        in_spec = pl.BlockSpec(in_shape, lambda j, n: (n, 0, 0))
        w_spec = pl.BlockSpec(w_shape, lambda j, n: (0, 0, j))
        b_spec = pl.BlockSpec(b_shape, lambda j, n: (0, j))
        out_spec = pl.BlockSpec(o_shape, lambda j, n: (n, 0, j))

    out = pl.pallas_call(
        repvgg_kernel,
        out_shape=jax.ShapeDtypeStruct((N_pad, H, WCp), out_dtype),
        grid=grid,
        in_specs=[in_spec, w_spec, b_spec],
        out_specs=out_spec,
        compiler_params=pltpu.CompilerParams(
            dimension_semantics=("parallel", "parallel"),
            vmem_limit_bytes=vmem_limit,
        ),
    )(x_lin, w_band, bias_row)

    if N_pad != N:
        out = out[:N]
    return out


def repvgg_block(x_nchw, w3_hwio, bias, *, compute_dtype=jnp.bfloat16,
                 out_dtype=None):
    """Convenience NCHW-in / NCHW-out wrapper (matches the PyTorch module I/O)."""
    N, Cin, H, W = x_nchw.shape
    Cout = w3_hwio.shape[-1]
    out_dtype = x_nchw.dtype if out_dtype is None else out_dtype
    w_band, bias_row = prepare_repvgg_weights(w3_hwio, bias, W,
                                              compute_dtype=compute_dtype)
    x_lin = nchw_to_lin(x_nchw, compute_dtype)
    out_lin = repvgg_block_lin(x_lin, w_band, bias_row, out_dtype=out_dtype)
    return lin_to_nchw(out_lin, W, Cout)


# --------------------------------------------------------------------------- #
# Parameter construction (deterministic) + references
# --------------------------------------------------------------------------- #
def fuse_bn(w_oihw, gamma, beta, mean, var, eps=1e-5):
    """Fold BatchNorm2d (eval / running stats) into conv weight (OIHW) and bias."""
    std = jnp.sqrt(var + eps)
    scale = gamma / std
    w_fused = w_oihw * scale[:, None, None, None]
    b_fused = beta - mean * scale
    return w_fused, b_fused


def make_params(ch_in, ch_out, key):
    k1, k2, k3, k4, k5, k6 = jax.random.split(key, 6)
    w3_raw = jax.random.normal(k1, (ch_out, ch_in, 3, 3), jnp.float32) * 0.1
    w1_raw = jax.random.normal(k2, (ch_out, ch_in, 1, 1), jnp.float32) * 0.1
    gamma3 = 1.0 + 0.1 * jax.random.normal(k3, (ch_out,), jnp.float32)
    beta3 = 0.1 * jax.random.normal(k4, (ch_out,), jnp.float32)
    mean3 = 0.05 * jnp.arange(ch_out, dtype=jnp.float32)
    var3 = jnp.ones((ch_out,), jnp.float32) * 1.5
    gamma1 = 1.0 + 0.1 * jax.random.normal(k5, (ch_out,), jnp.float32)
    beta1 = 0.1 * jax.random.normal(k6, (ch_out,), jnp.float32)
    mean1 = -0.03 * jnp.arange(ch_out, dtype=jnp.float32)
    var1 = jnp.ones((ch_out,), jnp.float32) * 0.8

    w3_f, b3 = fuse_bn(w3_raw, gamma3, beta3, mean3, var3)
    w1_f, b1 = fuse_bn(w1_raw, gamma1, beta1, mean1, var1)

    # Exact RepVGG re-param: fold the 1x1 branch into the 3x3 center tap.
    w3_eq = w3_f.at[:, :, 1, 1].add(w1_f[:, :, 0, 0])        # OIHW
    b_eq = b3 + b1
    w3_hwio = jnp.transpose(w3_eq, (2, 3, 1, 0))              # (3, 3, Cin, Cout)
    return w3_hwio, b_eq, (w3_f, b3, w1_f, b1)


def reference_two_branch(x_nchw, w3_f, b3, w1_f, b1):
    """Pure-JAX f32 reference matching the PyTorch module (two branches + ReLU)."""
    dn3 = lax.conv_dimension_numbers(x_nchw.shape, w3_f.shape,
                                     ("NCHW", "OIHW", "NCHW"))
    y3 = lax.conv_general_dilated(x_nchw, w3_f, (1, 1), ((1, 1), (1, 1)),
                                  dimension_numbers=dn3,
                                  precision=lax.Precision.HIGHEST)
    dn1 = lax.conv_dimension_numbers(x_nchw.shape, w1_f.shape,
                                     ("NCHW", "OIHW", "NCHW"))
    y1 = lax.conv_general_dilated(x_nchw, w1_f, (1, 1), ((0, 0), (0, 0)),
                                  dimension_numbers=dn1,
                                  precision=lax.Precision.HIGHEST)
    y = y3 + b3[None, :, None, None] + y1 + b1[None, :, None, None]
    return jnp.maximum(y, 0.0)


def reference_folded_bf16(x_nchw, w3_hwio, bias):
    """Same math as the kernel at the kernel's bf16 input precision, f32 accumulate."""
    xq = x_nchw.astype(jnp.bfloat16).astype(jnp.float32)
    wq = w3_hwio.astype(jnp.bfloat16).astype(jnp.float32)
    x_nhwc = jnp.transpose(xq, (0, 2, 3, 1))
    dn = lax.conv_dimension_numbers(x_nhwc.shape, wq.shape,
                                    ("NHWC", "HWIO", "NHWC"))
    y = lax.conv_general_dilated(x_nhwc, wq, (1, 1), ((1, 1), (1, 1)),
                                 dimension_numbers=dn,
                                 precision=lax.Precision.HIGHEST)
    y = jnp.maximum(y + bias[None, None, None, :], 0.0)
    return jnp.transpose(y, (0, 3, 1, 2))


# --------------------------------------------------------------------------- #
# Self-test
# --------------------------------------------------------------------------- #
if __name__ == "__main__":
    key = jax.random.PRNGKey(0)
    kx, kp = jax.random.split(key)

    N, C_IN, C_OUT, H, W = 2, 4, 4, 16, 16
    x = jax.random.normal(kx, (N, C_IN, H, W), jnp.float32)

    w3_hwio, bias, raw = make_params(C_IN, C_OUT, kp)

    # Prepared weights: built once, reused across every forward call.
    w_band, bias_row = prepare_repvgg_weights(w3_hwio, bias, W)

    @jax.jit
    def fwd(x_nchw):
        x_lin = nchw_to_lin(x_nchw)
        out_lin = repvgg_block_lin(x_lin, w_band, bias_row,
                                   out_dtype=jnp.float32)
        return lin_to_nchw(out_lin, W, C_OUT)

    y = jax.block_until_ready(fwd(x))
    assert y.shape == (N, C_OUT, H, W)

    # Structural check: identical math at the kernel's bf16 input precision
    # (bf16 x bf16 products are exact in f32, so this is tight).
    y_q = reference_folded_bf16(x, w3_hwio, bias)
    assert jnp.allclose(y, y_q, atol=1e-4, rtol=1e-4), \
        "mismatch vs bf16-precision reference"

    # Module-semantics check (full-f32 two-branch RepVGG): bf16 quantization only.
    y_fp = reference_two_branch(x, *raw)
    assert jnp.allclose(y, y_fp, atol=1e-1, rtol=0.0), \
        "mismatch vs f32 module reference"

    print("KERNEL_OK")
</pallas_src>

<mosaic_0001>
module attributes {stable_mosaic.version = 11 : i64} {
  func.func @repvgg_kernel(%arg0: i32, %arg1: i32, %arg2: memref<1x18x72xbf16, #tpu.memory_space<vmem>>, %arg3: memref<3x72x128xbf16, #tpu.memory_space<vmem>>, %arg4: memref<1x128xf32, #tpu.memory_space<vmem>>, %arg5: memref<1x16x128xf32, #tpu.memory_space<vmem>>) attributes {dimension_semantics = [#tpu.dimension_semantics<parallel>, #tpu.dimension_semantics<parallel>], iteration_bounds = array<i64: 1, 2>, scalar_prefetch = 0 : i64, scratch_operands = 0 : i64, tpu.core_type = #tpu.core_type<tc>, window_params = [{transform_indices = @transform_0, window_bounds = array<i64: 1, 18, 72>}, {transform_indices = @transform_1, window_bounds = array<i64: 3, 72, 128>}, {transform_indices = @transform_2, window_bounds = array<i64: 1, 128>}, {transform_indices = @transform_3, window_bounds = array<i64: 1, 16, 128>}]} {
    %c0 = arith.constant 0 : index
    %c0_0 = arith.constant 0 : index
    %c0_1 = arith.constant 0 : index
    %0 = vector.load %arg2[%c0, %c0_0, %c0_1] : memref<1x18x72xbf16, #tpu.memory_space<vmem>>, vector<1x16x72xbf16>
    %1 = vector.shape_cast %0 : vector<1x16x72xbf16> to vector<16x72xbf16>
    %c0_2 = arith.constant 0 : index
    %c0_3 = arith.constant 0 : index
    %c0_4 = arith.constant 0 : index
    %2 = vector.load %arg3[%c0_2, %c0_3, %c0_4] : memref<3x72x128xbf16, #tpu.memory_space<vmem>>, vector<1x72x128xbf16>
    %3 = vector.shape_cast %2 : vector<1x72x128xbf16> to vector<72x128xbf16>
    %cst = arith.constant dense<0.000000e+00> : vector<16x128xf32>
    %4 = tpu.matmul %1, %3, %cst {dimension_numbers = #tpu.dot_dimension_numbers<[1], [0], [0], [1], [0, 0, 1, 1], [], []>} : vector<16x72xbf16>, vector<72x128xbf16>, vector<16x128xf32> -> vector<16x128xf32>
    %c0_5 = arith.constant 0 : index
    %c1 = arith.constant 1 : index
    %c0_6 = arith.constant 0 : index
    %5 = vector.load %arg2[%c0_5, %c1, %c0_6] : memref<1x18x72xbf16, #tpu.memory_space<vmem>>, vector<1x16x72xbf16>
    %6 = vector.shape_cast %5 : vector<1x16x72xbf16> to vector<16x72xbf16>
    %c1_7 = arith.constant 1 : index
    %c0_8 = arith.constant 0 : index
    %c0_9 = arith.constant 0 : index
    %7 = vector.load %arg3[%c1_7, %c0_8, %c0_9] : memref<3x72x128xbf16, #tpu.memory_space<vmem>>, vector<1x72x128xbf16>
    %8 = vector.shape_cast %7 : vector<1x72x128xbf16> to vector<72x128xbf16>
    %cst_10 = arith.constant dense<0.000000e+00> : vector<16x128xf32>
    %9 = tpu.matmul %6, %8, %cst_10 {dimension_numbers = #tpu.dot_dimension_numbers<[1], [0], [0], [1], [0, 0, 1, 1], [], []>} : vector<16x72xbf16>, vector<72x128xbf16>, vector<16x128xf32> -> vector<16x128xf32>
    %10 = arith.addf %4, %9 : vector<16x128xf32>
    %c0_11 = arith.constant 0 : index
    %c2 = arith.constant 2 : index
    %c0_12 = arith.constant 0 : index
    %11 = vector.load %arg2[%c0_11, %c2, %c0_12] : memref<1x18x72xbf16, #tpu.memory_space<vmem>>, vector<1x16x72xbf16>
    %12 = vector.shape_cast %11 : vector<1x16x72xbf16> to vector<16x72xbf16>
    %c2_13 = arith.constant 2 : index
    %c0_14 = arith.constant 0 : index
    %c0_15 = arith.constant 0 : index
    %13 = vector.load %arg3[%c2_13, %c0_14, %c0_15] : memref<3x72x128xbf16, #tpu.memory_space<vmem>>, vector<1x72x128xbf16>
    %14 = vector.shape_cast %13 : vector<1x72x128xbf16> to vector<72x128xbf16>
    %cst_16 = arith.constant dense<0.000000e+00> : vector<16x128xf32>
    %15 = tpu.matmul %12, %14, %cst_16 {dimension_numbers = #tpu.dot_dimension_numbers<[1], [0], [0], [1], [0, 0, 1, 1], [], []>} : vector<16x72xbf16>, vector<72x128xbf16>, vector<16x128xf32> -> vector<16x128xf32>
    %16 = arith.addf %10, %15 : vector<16x128xf32>
    %c0_17 = arith.constant 0 : index
    %c0_18 = arith.constant 0 : index
    %17 = vector.load %arg4[%c0_17, %c0_18] : memref<1x128xf32, #tpu.memory_space<vmem>>, vector<1x128xf32>
    %18 = vector.broadcast %17 : vector<1x128xf32> to vector<16x128xf32>
    %19 = arith.addf %16, %18 : vector<16x128xf32>
    %cst_19 = arith.constant 0.000000e+00 : f32
    %20 = vector.broadcast %cst_19 : f32 to vector<16x128xf32>
    %21 = arith.maximumf %19, %20 : vector<16x128xf32>
    %c0_20 = arith.constant 0 : index
    %c0_21 = arith.constant 0 : index
    %c0_22 = arith.constant 0 : index
    %22 = vector.load %arg5[%c0_20, %c0_21, %c0_22] : memref<1x16x128xf32, #tpu.memory_space<vmem>>, vector<1x16x128xf32>
    %23 = vector.shape_cast %22 : vector<1x16x128xf32> to vector<16x128xf32>
    %24 = vector.shape_cast %21 : vector<16x128xf32> to vector<1x16x128xf32>
    tpu.vector_store %arg5[%c0_20, %c0_21, %c0_22], %24 {strides = array<i32>} : memref<1x16x128xf32, #tpu.memory_space<vmem>>, vector<1x16x128xf32>,
    return
  }
  func.func @transform_0(%arg0: i32, %arg1: i32) -> (i32, i32, i32) {
    %c0_i32 = arith.constant 0 : i32
    %c0_i32_0 = arith.constant 0 : i32
    %c0_i32_1 = arith.constant 0 : i32
    return %arg1, %c0_i32, %c0_i32_0 : i32, i32, i32
  }
  func.func @transform_1(%arg0: i32, %arg1: i32) -> (i32, i32, i32) {
    %c0_i32 = arith.constant 0 : i32
    %c0_i32_0 = arith.constant 0 : i32
    %c0_i32_1 = arith.constant 0 : i32
    return %c0_i32, %c0_i32_0, %arg0 : i32, i32, i32
  }
  func.func @transform_2(%arg0: i32, %arg1: i32) -> (i32, i32) {
    %c0_i32 = arith.constant 0 : i32
    %c0_i32_0 = arith.constant 0 : i32
    return %c0_i32, %arg0 : i32, i32
  }
  func.func @transform_3(%arg0: i32, %arg1: i32) -> (i32, i32, i32) {
    %c0_i32 = arith.constant 0 : i32
    %c0_i32_0 = arith.constant 0 : i32
    return %arg1, %c0_i32, %arg0 : i32, i32, i32
  }
}

</mosaic_0001>

<llo_original>
// kernel: fwd.1
$region0: #{fwd.1}
  #allocation0 [shape = 'u32[]', space=smem, size = 0x4, offset = 0x4, fixed_abs, tag = 'smem constant byte address 0x4 - core index']
  #allocation1 [shape = 'u32[144,128]{1,0:T(1,128)}', space=vmem, size = 0x12000, scoped, tag = 'internal scratch']
  %s0 = inlined_call_operand.vmem [shape: bf16[2,18,72], index: 0, kind: input, shape index: {}]
  %s1 = inlined_call_operand.vmem [shape: bf16[3,72,128], index: 1, kind: input, shape index: {}]
  %s2 = inlined_call_operand.vmem [shape: f32[1,128], index: 2, kind: input, shape index: {}]
  %s3 = inlined_call_operand.vmem [shape: f32[2,16,128], index: 3, kind: output, shape index: {}]
  %s4 = sld [smem:[#allocation0]]
  $region45: #{fwd.1} parent=0
    _
  %s6 = ssub.s32 1, %s4
  %s7 = scalar_select 0, %s6, %s4
  loop: start=0, step=1, limit=4
  $region2: #{fwd.1} parent=0 // loop_pre_header
    _
  $region3: #{fwd.1} parent=0 // loop_header
    %s9 = sphi 0, %s13
    %p10 = scmp.ge.s32.totalorder %s9, 4
    %s16 = sphi 0, %s28
    %s17 = sphi 0, %s24
    %s18 = sphi 0, %s16
    %s19 = sphi 0, %s17
    %s20 = sphi 0, %s18
    %s21 = sphi 0, %s19
    %s31 = sphi 0, %s33
    %s34 = sphi 0, %s31
    %s35 = sphi 0, %s34
    %s51 = sphi 0, %s35
    %s57 = sphi 0, %s59
    %s60 = sphi 0, %s57
    %s61 = sphi 0, %s60
    %s77 = sphi 0, %s61
    %s83 = sphi 0, %s85
    %s86 = sphi 0, %s83
    %s87 = sphi 0, %s86
    %s103 = sphi 0, %s87
    %s111 = sphi 0, %s113
    %s114 = sphi 0, %s111
    %s115 = sphi 0, %s114
    %s131 = sphi 0, %s115
  $region4: #{fwd.1} parent=0 // loop_header_branch
    %12 = sbr.rel (%p10) target = $region8
  $region5: #{fwd.1} parent=0 // loop_body
    %s14 = ssub.s32 %s9, 1
    %s15 = ssub.s32 %s9, 2
    %s22 = sadd.s32 1, %s17
    %p23 = scmp.ge.s32.totalorder %s22, 2
    %s24 = scalar_select %p23, 0, %s22
    %s25 = sadd.s32 1, %s16
    %s26 = scalar_select %p23, %s25, %s16
    %p27 = scmp.ge.s32.totalorder %s26, 1
    %s28 = scalar_select %p27, 0, %s26
    %s29 = ssub.s32 %s17, %s24
    %p30 = scmp.eq.s32.totalorder %s29, 0
    %s32 = sadd.s32 %s31, 1
    %s33 = scalar_select %p30, %s31, %s32
    %p36 = pneg %p30
    %p37 = scmp.eq.s32.totalorder %s9, 1
    %p38 = por %p36, %p37
    %p39 = scmp.ne.s32.totalorder %s31, %s34
    %p40 = scmp.eq.s32.totalorder %s9, 0
    %p41 = por %p39, %p40
    %p42 = scmp.ne.s32.totalorder %s31, %s34
    %p43 = scmp.eq.s32.totalorder %s14, 1
    %p44 = por %p42, %p43
    %p45 = scmp.ne.s32.totalorder %s34, %s35
    %p46 = scmp.eq.s32.totalorder %s14, 0
    %p47 = por %p45, %p46
    %p48 = scmp.ne.s32.totalorder %s34, %s35
    %p49 = scmp.eq.s32.totalorder %s15, 1
    %p50 = por %p48, %p49
    %p52 = scmp.ne.s32.totalorder %s35, %s51
    %p53 = scmp.eq.s32.totalorder %s15, 0
    %p54 = por %p52, %p53
    %s55 = ssub.s32 %s16, %s28
    %p56 = scmp.eq.s32.totalorder %s55, 0
    %s58 = sadd.s32 %s57, 1
    %s59 = scalar_select %p56, %s57, %s58
    %p62 = pneg %p56
    %p63 = scmp.eq.s32.totalorder %s9, 1
    %p64 = por %p62, %p63
    %p65 = scmp.ne.s32.totalorder %s57, %s60
    %p66 = scmp.eq.s32.totalorder %s9, 0
    %p67 = por %p65, %p66
    %p68 = scmp.ne.s32.totalorder %s57, %s60
    %p69 = scmp.eq.s32.totalorder %s14, 1
    %p70 = por %p68, %p69
    %p71 = scmp.ne.s32.totalorder %s60, %s61
    %p72 = scmp.eq.s32.totalorder %s14, 0
    %p73 = por %p71, %p72
    %p74 = scmp.ne.s32.totalorder %s60, %s61
    %p75 = scmp.eq.s32.totalorder %s15, 1
    %p76 = por %p74, %p75
    %p78 = scmp.ne.s32.totalorder %s61, %s77
    %p79 = scmp.eq.s32.totalorder %s15, 0
    %p80 = por %p78, %p79
    %s81 = ssub.s32 %s16, %s28
    %p82 = scmp.eq.s32.totalorder %s81, 0
    %s84 = sadd.s32 %s83, 1
    %s85 = scalar_select %p82, %s83, %s84
    %p88 = pneg %p82
    %p89 = scmp.eq.s32.totalorder %s9, 1
    %p90 = por %p88, %p89
    %p91 = scmp.ne.s32.totalorder %s83, %s86
    %p92 = scmp.eq.s32.totalorder %s9, 0
    %p93 = por %p91, %p92
    %p94 = scmp.ne.s32.totalorder %s83, %s86
    %p95 = scmp.eq.s32.totalorder %s14, 1
    %p96 = por %p94, %p95
    %p97 = scmp.ne.s32.totalorder %s86, %s87
    %p98 = scmp.eq.s32.totalorder %s14, 0
    %p99 = por %p97, %p98
    %p100 = scmp.ne.s32.totalorder %s86, %s87
    %p101 = scmp.eq.s32.totalorder %s15, 1
    %p102 = por %p100, %p101
    %p104 = scmp.ne.s32.totalorder %s87, %s103
    %p105 = scmp.eq.s32.totalorder %s15, 0
    %p106 = por %p104, %p105
    %s107 = ssub.s32 %s17, %s24
    %s108 = ssub.s32 %s16, %s28
    %s109 = sor.u32 %s107, %s108
    %p110 = scmp.eq.s32.totalorder %s109, 0
    %s112 = sadd.s32 %s111, 1
    %s113 = scalar_select %p110, %s111, %s112
    %p116 = pneg %p110
    %p117 = scmp.eq.s32.totalorder %s9, 1
    %p118 = por %p116, %p117
    %p119 = scmp.ne.s32.totalorder %s111, %s114
    %p120 = scmp.eq.s32.totalorder %s9, 0
    %p121 = por %p119, %p120
    %p122 = scmp.ne.s32.totalorder %s111, %s114
    %p123 = scmp.eq.s32.totalorder %s14, 1
    %p124 = por %p122, %p123
    %p125 = scmp.ne.s32.totalorder %s114, %s115
    %p126 = scmp.eq.s32.totalorder %s14, 0
    %p127 = por %p125, %p126
    %p128 = scmp.ne.s32.totalorder %s114, %s115
    %p129 = scmp.eq.s32.totalorder %s15, 1
    %p130 = por %p128, %p129
    %p132 = scmp.ne.s32.totalorder %s115, %s131
    %p133 = scmp.eq.s32.totalorder %s15, 0
    %p134 = por %p132, %p133
    %p135 = scmp.le.s32.totalorder 1, %s9
    %p136 = scmp.lt.s32.totalorder %s9, 3
    %p137 = pnand %p135, %p136
    %p138 = pneg %p137
    // Predicated region
    $region9: #{fwd.1} parent=5 // pred_check
      _
    $region10: #{fwd.1} parent=5 // pred_check_branch
      %140 = sbr.rel (%p137) target = $region12
    $region11: #{fwd.1} parent=5 // pred_region
      %s141 = ssub.s32 %s9, 1
      // Predicated region
      $region13: #{fwd.1} parent=11 // pred_check
        %p142 = pneg %p73
      $region14: #{fwd.1} parent=11 // pred_check_branch
        %144 = sbr.rel (%p142) target = $region16
      $region15: #{fwd.1} parent=11 // pred_region
        %p145 = scmp.lt.s32.totalorder %s18, 0
        %s146 = scalar_select %p145, %s18, 0
        %s147 = smul.addr %s146, 4
        %s148 = scalar_lea.vmem %s1, %s147
      $region16: #{fwd.1} parent=11 // pred_fallthru
        _
      // Predicated region
      $region17: #{fwd.1} parent=11 // pred_check
        %p149 = pneg %p99
      $region18: #{fwd.1} parent=11 // pred_check_branch
        %151 = sbr.rel (%p149) target = $region20
      $region19: #{fwd.1} parent=11 // pred_region
        %p152 = scmp.lt.s32.totalorder %s18, 0
        %s153 = scalar_select %p152, %s18, 0
        %s154 = scalar_lea.vmem %s2, %s153
      $region20: #{fwd.1} parent=11 // pred_fallthru
        _
    $region12: #{fwd.1} parent=5 // pred_fallthru
      _
    %p155 = scmp.lt.s32.totalorder %s9, 2
    // Predicated region
    $region21: #{fwd.1} parent=5 // pred_check
      %p156 = pneg %p155
    $region22: #{fwd.1} parent=5 // pred_check_branch
      %158 = sbr.rel (%p156) target = $region24
    $region23: #{fwd.1} parent=5 // pred_region
      // Predicated region
      $region25: #{fwd.1} parent=23 // pred_check
        %p159 = pneg %p41
      $region26: #{fwd.1} parent=23 // pred_check_branch
        %161 = sbr.rel (%p159) target = $region28
      $region27: #{fwd.1} parent=23 // pred_region
        %p162 = scmp.lt.s32.totalorder %s17, 1
        %s163 = scalar_select %p162, %s17, 1
        %s164 = smul.addr %s163, 3
        %s165 = smul.addr %s164, 4
        %s166 = scalar_lea.vmem %s0, %s165
      $region28: #{fwd.1} parent=23 // pred_fallthru
        _
    $region24: #{fwd.1} parent=5 // pred_fallthru
      _
    %p167 = scmp.le.s32.totalorder 1, %s9
    %p168 = scmp.lt.s32.totalorder %s9, 3
    %p169 = pnand %p167, %p168
    %p170 = pneg %p169
    // Predicated region
    $region29: #{fwd.1} parent=5 // pred_check
      _
    $region30: #{fwd.1} parent=5 // pred_check_branch
      %172 = sbr.rel (%p169) target = $region32
    $region31: #{fwd.1} parent=5 // pred_region
      %s173 = ssub.s32 %s9, 1
      %p174 = scmp.lt.s32.totalorder %s19, 1
      %s175 = scalar_select %p174, %s19, 1
      %s176 = smul.addr %s175, 3
      %s177 = smul.addr %s176, 4
      %s178 = scalar_lea.vmem %s0, %s177
      %p179 = pneg %p47
      %p180 = pneg %p44
      %p181 = scmp.lt.s32.totalorder %s18, 0
      %s182 = scalar_select %p181, %s18, 0
      %s183 = smul.addr %s182, 4
      %s184 = scalar_lea.vmem %s1, %s183
      %p185 = pneg %p73
      %p186 = pneg %p70
      %p187 = scmp.lt.s32.totalorder %s18, 0
      %s188 = scalar_select %p187, %s18, 0
      %s189 = scalar_lea.vmem %s2, %s188
      %p190 = pneg %p99
      %p191 = pneg %p96
      %p192 = pneg %p127
      %p193 = pneg %p124
      %p194 = scmp.lt.s32.totalorder %s19, 1
      %s195 = scalar_select %p194, %s19, 1
      %p196 = scmp.lt.s32.totalorder %s18, 0
      %s197 = scalar_select %p196, %s18, 0
      %s198 = smul.addr %s195, 2
      %s199 = sadd.s32 %s197, %s198
      %s200 = smul.addr %s199, 8
      %s201 = scalar_lea.vmem %s3, %s200
      %p202 = scmp.lt.s32.totalorder %s19, 1
      %s203 = scalar_select %p202, %s19, 1
      %s204 = smul.addr %s203, 3
      %s205 = smul.addr %s204, 4
      %s206 = scalar_lea.vmem %s0, %s205
      %p207 = scmp.lt.s32.totalorder %s18, 0
      %s208 = scalar_select %p207, %s18, 0
      %s209 = smul.addr %s208, 4
      %s210 = scalar_lea.vmem %s1, %s209
      %p211 = scmp.lt.s32.totalorder %s18, 0
      %s212 = scalar_select %p211, %s18, 0
      %s213 = scalar_lea.vmem %s2, %s212
      %p214 = scmp.lt.s32.totalorder %s19, 1
      %s215 = scalar_select %p214, %s19, 1
      %p216 = scmp.lt.s32.totalorder %s18, 0
      %s217 = scalar_select %p216, %s18, 0
      %s218 = smul.addr %s215, 2
      %s219 = sadd.s32 %s217, %s218
      %s220 = smul.addr %s219, 8
      %s221 = scalar_lea.vmem %s3, %s220
      %v223 = vld [vmem:[%s206] sm:$0xf]
      %v224 = vld [vmem:[%s206 + $0x4] sm:$0xf]
      %v225 = vld [vmem:[%s210] sm:$0xf]
      %v226 = vld [vmem:[%s210 + $0x4] sm:$0xf]
      %v227 = vld [vmem:[%s210 + $0x8] sm:$0xf]
      %v228 = vld [vmem:[%s210 + $0xc] sm:$0xf]
      %v229 = vld [vmem:[%s210 + $0x10] sm:$0xf]
      %v230 = vld [vmem:[%s210 + $0x14] sm:$0xf]
      %v231 = vld [vmem:[%s210 + $0x18] sm:$0xf]
      %v232 = vld [vmem:[%s210 + $0x1c] sm:$0xf]
      %v233 = vld [vmem:[%s210 + $0x20] sm:$0xf]
      %v234 = vld [vmem:[%s206 + $0x8] sm:$0x1]
      %s235 = scalar_lea.vmem %s210, 36
      %v236 = vld [vmem:[%s235] sm:$0xf]
      %v237 = vld [vmem:[%s235 + $0x4] sm:$0xf]
      %v238 = vld [vmem:[%s235 + $0x8] sm:$0xf]
      %v239 = vld [vmem:[%s235 + $0xc] sm:$0xf]
      %v240 = vld [vmem:[%s235 + $0x10] sm:$0xf]
      %v241 = vld [vmem:[%s235 + $0x14] sm:$0xf]
      %v242 = vld [vmem:[%s235 + $0x18] sm:$0xf]
      %v243 = vld [vmem:[%s235 + $0x1c] sm:$0xf]
      %v244 = vld [vmem:[%s235 + $0x20] sm:$0xf]
      %v248 = vunpack.c.l.b16 %v223
      %v249 = vunpack.c.l.b16 %v224
      %v250 = vunpack.c.l.b16 %v234
      %v251 = vpack.c.b16 %v249, %v248
      %v252 = vpack.c.b16 %v250, %v250
      %vm253 = vsmask.f32 7424
      %v255 = vshrl.u32 %v251, 16
      %v257 = vshll.u32 %v251, 16
      %v259 = vrot.slane %v257, 1
      %v260 = vor.u32 %v255, %v259
      %v262 = vshll.u32 %v252, 16
      %v264 = vrot.slane %v262, 1
      %v265 = vsel %vm253, %v260, %v264
      %v275 = vunpack.c.l.b16 %v236
      %v276 = vunpack.c.l.b16 %v237
      %v277 = vunpack.c.l.b16 %v238
      %v278 = vunpack.c.l.b16 %v239
      %v279 = vunpack.c.l.b16 %v240
      %v280 = vunpack.c.l.b16 %v241
      %v281 = vunpack.c.l.b16 %v242
      %v282 = vunpack.c.l.b16 %v243
      %v283 = vunpack.c.l.b16 %v244
      %v284 = vpack.c.b16 %v276, %v275
      %v285 = vpack.c.b16 %v278, %v277
      %v286 = vpack.c.b16 %v280, %v279
      %v287 = vpack.c.b16 %v282, %v281
      %v288 = vpack.c.b16 %v283, %v283
      %vm293 = vcmask 588800
      %v295 = vsel %vm293, %v265, 0
      %vm297 = vcmask 1043456
      %v299 = vsel %vm297, %v288, 0
      %301 = vmatprep.subr.bf16.mxu0 0
      %302 = vmatpush1.bf16.msra.mxu0 0
      %303 = vmatprep.subr.bf16.mxu0 0
      %304 = vmatpush1.bf16.msra.mxu0 0
      %305 = vmatprep.subr.bf16.mxu0 0
      %306 = vmatpush1.bf16.msra.mxu0 0
      %307 = vmatprep.subr.bf16.mxu0 0
      %308 = vmatpush1.bf16.msra.mxu0 %v299
      %309 = vmatprep.subr.bf16.mxu0 0
      %310 = vmatpush1.bf16.msra.mxu0 %v287
      %311 = vmatprep.subr.bf16.mxu0 0
      %312 = vmatpush1.bf16.msra.mxu0 %v286
      %313 = vmatprep.subr.bf16.mxu0 0
      %314 = vmatpush1.bf16.msra.mxu0 %v285
      %315 = vmatprep.subr.bf16.mxu0 0
      %316 = vmatpush1.bf16.msra.mxu0 %v284
      %317 = vmatprep.subr.bf16.mxu0 0
      %318 = vmatpush2.bf16.msra.mxu0 0
      %319 = vmatprep.subr.bf16.mxu0 0
      %320 = vmatpush2.bf16.msra.mxu0 0
      %321 = vmatprep.subr.bf16.mxu0 0
      %322 = vmatpush2.bf16.msra.mxu0 0
      %323 = vmatprep.subr.bf16.mxu0 0
      %324 = vmatpush2.bf16.msra.mxu0 0
      %325 = vmatprep.subr.bf16.mxu0 0
      %326 = vmatpush2.bf16.msra.mxu0 0
      %327 = vmatprep.subr.bf16.mxu0 0
      %328 = vmatpush2.bf16.msra.mxu0 0
      %329 = vmatprep.subr.bf16.mxu0 0
      %330 = vmatpush2.bf16.msra.mxu0 0
      %331 = vmatprep.subr.bf16.mxu0 0
      %332 = vmatpush2.bf16.msra.mxu0 0
      %333 = vmatprep.mubr.bf16.mxu0 0
      %334 = vmatmul.mubr.bf16.gmra.mxu0 %v295
      %v335 = vpop.f32.mrf.mxu0
      %v336 = vadd.f32 0.0, %v335
      %v337 = vpop.f32.mrf.mxu0
      %v338 = vpop.f32.mrf.mxu0
      %v339 = vadd.f32 0.0, %v338
      %v340 = vpop.f32.mrf.mxu0
      %341 = vdwg.mxu0
      %v351 = vunpack.c.l.b16 %v225
      %v352 = vunpack.c.l.b16 %v226
      %v353 = vunpack.c.l.b16 %v227
      %v354 = vunpack.c.l.b16 %v228
      %v355 = vunpack.c.l.b16 %v229
      %v356 = vunpack.c.l.b16 %v230
      %v357 = vunpack.c.l.b16 %v231
      %v358 = vunpack.c.l.b16 %v232
      %v359 = vunpack.c.l.b16 %v233
      %v360 = vpack.c.b16 %v352, %v351
      %v361 = vpack.c.b16 %v354, %v353
      %v362 = vpack.c.b16 %v356, %v355
      %v363 = vpack.c.b16 %v358, %v357
      %v364 = vpack.c.b16 %v359, %v359
      %v369 = vsel %vm293, %v251, 0
      %v372 = vsel %vm297, %v364, 0
      %374 = vmatprep.subr.bf16.mxu0 0
      %375 = vmatpush1.bf16.msra.mxu0 0
      %376 = vmatprep.subr.bf16.mxu0 0
      %377 = vmatpush1.bf16.msra.mxu0 0
      %378 = vmatprep.subr.bf16.mxu0 0
      %379 = vmatpush1.bf16.msra.mxu0 0
      %380 = vmatprep.subr.bf16.mxu0 0
      %381 = vmatpush1.bf16.msra.mxu0 %v372
      %382 = vmatprep.subr.bf16.mxu0 0
      %383 = vmatpush1.bf16.msra.mxu0 %v363
      %384 = vmatprep.subr.bf16.mxu0 0
      %385 = vmatpush1.bf16.msra.mxu0 %v362
      %386 = vmatprep.subr.bf16.mxu0 0
      %387 = vmatpush1.bf16.msra.mxu0 %v361
      %388 = vmatprep.subr.bf16.mxu0 0
      %389 = vmatpush1.bf16.msra.mxu0 %v360
      %390 = vmatprep.subr.bf16.mxu0 0
      %391 = vmatpush2.bf16.msra.mxu0 0
      %392 = vmatprep.subr.bf16.mxu0 0
      %393 = vmatpush2.bf16.msra.mxu0 0
      %394 = vmatprep.subr.bf16.mxu0 0
      %395 = vmatpush2.bf16.msra.mxu0 0
      %396 = vmatprep.subr.bf16.mxu0 0
      %397 = vmatpush2.bf16.msra.mxu0 0
      %398 = vmatprep.subr.bf16.mxu0 0
      %399 = vmatpush2.bf16.msra.mxu0 0
      %400 = vmatprep.subr.bf16.mxu0 0
      %401 = vmatpush2.bf16.msra.mxu0 0
      %402 = vmatprep.subr.bf16.mxu0 0
      %403 = vmatpush2.bf16.msra.mxu0 0
      %404 = vmatprep.subr.bf16.mxu0 0
      %405 = vmatpush2.bf16.msra.mxu0 0
      %406 = vmatprep.mubr.bf16.mxu0 0
      %407 = vmatmul.mubr.bf16.gmra.mxu0 %v369
      %v408 = vpop.f32.mrf.mxu0
      %v409 = vadd.f32 %v336, %v408
      %v410 = vpop.f32.mrf.mxu0
      %v411 = vpop.f32.mrf.mxu0
      %v412 = vadd.f32 %v339, %v411
      %v413 = vpop.f32.mrf.mxu0
      %414 = vdwg.mxu0
      %v415 = vld [vmem:[%s206] sm:$0xe]
      %s416 = scalar_lea.vmem %s210, 72
      %v417 = vld [vmem:[%s416] sm:$0xf]
      %v418 = vld [vmem:[%s416 + $0x4] sm:$0xf]
      %v419 = vld [vmem:[%s416 + $0x8] sm:$0xf]
      %v420 = vld [vmem:[%s416 + $0xc] sm:$0xf]
      %v421 = vld [vmem:[%s416 + $0x10] sm:$0xf]
      %v422 = vld [vmem:[%s416 + $0x14] sm:$0xf]
      %v423 = vld [vmem:[%s416 + $0x18] sm:$0xf]
      %v424 = vld [vmem:[%s416 + $0x1c] sm:$0xf]
      %v425 = vld [vmem:[%s416 + $0x20] sm:$0xf]
      %v427 = vunpack.c.l.b16 %v415
      %v428 = vpack.c.b16 %v249, %v427
      %vm429 = vcmask 1046528
      %v430 = vrot.slane %v428, 1
      %v431 = vrot.slane %v252, 1
      %v432 = vsel %vm429, %v430, %v431
      %v442 = vunpack.c.l.b16 %v417
      %v443 = vunpack.c.l.b16 %v418
      %v444 = vunpack.c.l.b16 %v419
      %v445 = vunpack.c.l.b16 %v420
      %v446 = vunpack.c.l.b16 %v421
      %v447 = vunpack.c.l.b16 %v422
      %v448 = vunpack.c.l.b16 %v423
      %v449 = vunpack.c.l.b16 %v424
      %v450 = vunpack.c.l.b16 %v425
      %v451 = vpack.c.b16 %v443, %v442
      %v452 = vpack.c.b16 %v445, %v444
      %v453 = vpack.c.b16 %v447, %v446
      %v454 = vpack.c.b16 %v449, %v448
      %v455 = vpack.c.b16 %v450, %v450
      %v461 = vsel %vm293, %v432, 0
      %v464 = vsel %vm297, %v455, 0
      %466 = vmatprep.subr.bf16.mxu0 0
      %467 = vmatpush1.bf16.msra.mxu0 0
      %468 = vmatprep.subr.bf16.mxu0 0
      %469 = vmatpush1.bf16.msra.mxu0 0
      %470 = vmatprep.subr.bf16.mxu0 0
      %471 = vmatpush1.bf16.msra.mxu0 0
      %472 = vmatprep.subr.bf16.mxu0 0
      %473 = vmatpush1.bf16.msra.mxu0 %v464
      %474 = vmatprep.subr.bf16.mxu0 0
      %475 = vmatpush1.bf16.msra.mxu0 %v454
      %476 = vmatprep.subr.bf16.mxu0 0
      %477 = vmatpush1.bf16.msra.mxu0 %v453
      %478 = vmatprep.subr.bf16.mxu0 0
      %479 = vmatpush1.bf16.msra.mxu0 %v452
      %480 = vmatprep.subr.bf16.mxu0 0
      %481 = vmatpush1.bf16.msra.mxu0 %v451
      %482 = vmatprep.subr.bf16.mxu0 0
      %483 = vmatpush2.bf16.msra.mxu0 0
      %484 = vmatprep.subr.bf16.mxu0 0
      %485 = vmatpush2.bf16.msra.mxu0 0
      %486 = vmatprep.subr.bf16.mxu0 0
      %487 = vmatpush2.bf16.msra.mxu0 0
      %488 = vmatprep.subr.bf16.mxu0 0
      %489 = vmatpush2.bf16.msra.mxu0 0
      %490 = vmatprep.subr.bf16.mxu0 0
      %491 = vmatpush2.bf16.msra.mxu0 0
      %492 = vmatprep.subr.bf16.mxu0 0
      %493 = vmatpush2.bf16.msra.mxu0 0
      %494 = vmatprep.subr.bf16.mxu0 0
      %495 = vmatpush2.bf16.msra.mxu0 0
      %496 = vmatprep.subr.bf16.mxu0 0
      %497 = vmatpush2.bf16.msra.mxu0 0
      %498 = vmatprep.mubr.bf16.mxu0 0
      %499 = vmatmul.mubr.bf16.gmra.mxu0 %v461
      %v500 = vpop.f32.mrf.mxu0
      %v501 = vadd.f32 0.0, %v500
      %v502 = vpop.f32.mrf.mxu0
      %v503 = vpop.f32.mrf.mxu0
      %v504 = vadd.f32 0.0, %v503
      %v505 = vpop.f32.mrf.mxu0
      %506 = vdwg.mxu0
      %v507 = vadd.f32 %v409, %v501
      %v508 = vadd.f32 %v412, %v504
      %v509 = vld [vmem:[%s213] sm:$0x1]
      %v511 = vlaneseq
      %v512 = vshrl.u32 %v511, 7
      %v513 = vsub.s32 0, %v512
      %v514 = vrot.slane %v509, %v513
      %v516 = vadd.f32 %v507, %v514
      %v517 = vadd.f32 %v508, %v514
      %v518 = vmax.f32 %v516, 0.0
      %v519 = vmax.f32 %v517, 0.0
      %520 = vst [vmem:[%s221] sm:$0xff] %v518
      %521 = vst [vmem:[%s221 + $0x8] sm:$0xff] %v519
      %p522 = scmp.lt.s32.totalorder %s19, 1
      %s523 = scalar_select %p522, %s19, 1
      %p524 = scmp.lt.s32.totalorder %s18, 0
      %s525 = scalar_select %p524, %s18, 0
      %s526 = smul.addr %s523, 2
      %s527 = sadd.s32 %s525, %s526
      %s528 = smul.addr %s527, 8
      %s529 = scalar_lea.vmem %s3, %s528
      // Predicated region
      $region33: #{fwd.1} parent=31 // pred_check
        %p530 = pneg %p124
      $region34: #{fwd.1} parent=31 // pred_check_branch
        %532 = sbr.rel (%p530) target = $region36
      $region35: #{fwd.1} parent=31 // pred_region
        _
      $region36: #{fwd.1} parent=31 // pred_fallthru
        _
    $region32: #{fwd.1} parent=5 // pred_fallthru
      _
    %p533 = scmp.le.s32.totalorder 2, %s9
    // Predicated region
    $region37: #{fwd.1} parent=5 // pred_check
      %p534 = pneg %p533
    $region38: #{fwd.1} parent=5 // pred_check_branch
      %536 = sbr.rel (%p534) target = $region40
    $region39: #{fwd.1} parent=5 // pred_region
      %s537 = ssub.s32 %s9, 2
      // Predicated region
      $region41: #{fwd.1} parent=39 // pred_check
        %p538 = pneg %p130
      $region42: #{fwd.1} parent=39 // pred_check_branch
        %540 = sbr.rel (%p538) target = $region44
      $region43: #{fwd.1} parent=39 // pred_region
        %p541 = scmp.lt.s32.totalorder %s21, 1
        %s542 = scalar_select %p541, %s21, 1
        %p543 = scmp.lt.s32.totalorder %s20, 0
        %s544 = scalar_select %p543, %s20, 0
        %s545 = smul.addr %s542, 2
        %s546 = sadd.s32 %s544, %s545
        %s547 = smul.addr %s546, 8
        %s548 = scalar_lea.vmem %s3, %s547
      $region44: #{fwd.1} parent=39 // pred_fallthru
        _
    $region40: #{fwd.1} parent=5 // pred_fallthru
      _
  $region6: #{fwd.1} parent=0 // loop_footer
    %s13 = sadd.s32 1, %s9
  $region7: #{fwd.1} parent=0 // loop_footer_branch
    %8 = sbr.rel target = $region3
  $region8: #{fwd.1} parent=0 // loop_exit
    _

</llo_original>
